<compile_context>
chip_gen: v7x
topology: tpu7x:2x2x1
jax: 0.10.0
libtpu: 0.0.40
codegen_flags: <defaults>
</compile_context>

<pallas_src>
import jax
import jax.numpy as jnp
from jax.experimental import pallas as pl
from jax.experimental.pallas import tpu as pltpu

_EPS = 1e-12  # torch.nn.functional.normalize default eps


def _rmsnorm_kernel(x_ref, g_ref, o_ref):
    # x_ref: (tile_rows, D); g_ref: (1, D) pre-scaled gamma (f32); o_ref like x.
    x = x_ref[...].astype(jnp.float32)
    sumsq = jnp.sum(x * x, axis=-1, keepdims=True)        # per-row reduce (XLU)
    inv = jax.lax.rsqrt(jnp.maximum(sumsq, _EPS * _EPS))  # 1/max(||x||, eps), EUP
    o_ref[...] = (x * inv * g_ref[...]).astype(o_ref.dtype)


def _rmsnorm_packed_kernel(x_ref, g_ref, seg_ref, o_ref):
    # Lane-dense small-D path. x_ref: (tile_rows, k*D) with k original rows
    # packed per lane row; seg_ref: (k*D, k*D) block-diagonal ones matrix, so
    # (x*x) @ seg broadcasts each segment's sum-of-squares back over its D
    # lanes in a single MXU matmul (no cross-lane reshapes, no masked stores).
    x = x_ref[...].astype(jnp.float32)
    sumsq = jnp.dot(x * x, seg_ref[...], preferred_element_type=jnp.float32)
    inv = jax.lax.rsqrt(jnp.maximum(sumsq, _EPS * _EPS))
    o_ref[...] = (x * inv * g_ref[...]).astype(o_ref.dtype)


def rms_norm(x, gamma, *, target_tile_bytes=4 << 20):
    """x: (..., D), gamma: (D,). Returns same shape/dtype as x."""
    orig_shape = x.shape
    D = orig_shape[-1]
    scale = float(D) ** 0.5

    x2d = x.reshape(-1, D)
    rows = x2d.shape[0]
    gamma_f32 = gamma.astype(jnp.float32) * scale  # fold sqrt(D) into gamma once

    # --- Lane-dense packing for small D --------------------------------------
    k = 128 // D if (D < 128 and 128 % D == 0) else 1
    packed = (k > 1) and (rows % k == 0)
    if packed:
        rows = rows // k
        d_block = k * D
        x2d = x2d.reshape(rows, d_block)  # row-major relabel: free (no copy)
        g2d = jnp.tile(gamma_f32, (k,)).reshape(1, d_block)
        seg = jnp.kron(jnp.eye(k, dtype=jnp.float32),
                       jnp.ones((D, D), dtype=jnp.float32))
    else:
        # TODO(synk): D < 128 with 128 % D != 0 (or ragged rows) falls back to
        # the masked-store path; a padded/transposed layout could recover
        # lane density there too.
        d_block = D
        g2d = gamma_f32.reshape(1, D)

    # --- Tile sizing ----------------------------------------------------------
    itemsize = x2d.dtype.itemsize
    pack = max(8, 32 // itemsize)            # sublane packing: 8 f32 / 16 bf16 / 32 int8
    bytes_per_row = d_block * itemsize

    tile_rows = (target_tile_bytes // max(bytes_per_row, 1)) // pack * pack
    # Hard cap per tile (~8 MiB raw) so live VMEM stays well inside v7x's 64 MiB.
    cap_rows = ((8 << 20) // max(bytes_per_row, 1)) // pack * pack
    tile_rows = min(max(pack, tile_rows), max(pack, cap_rows))

    rows_padded = pl.cdiv(rows, pack) * pack
    tile_rows = max(pack, min(tile_rows, rows_padded))

    # Keep >= 2 grid steps whenever possible so the "parallel" axis can be
    # sharded across v7x's two TensorCores (no-op on v5e/v6e).
    if rows > pack:
        half = pl.cdiv(pl.cdiv(rows, 2), pack) * pack
        tile_rows = max(pack, min(tile_rows, half))

    grid = (pl.cdiv(rows, tile_rows),)

    # VMEM budget: 2x input + 2x output double buffers + ~2 f32-wide temporaries
    # (bf16 inputs upcast to f32 inside the kernel), clamped to [32, 48] MiB.
    tile_bytes = tile_rows * d_block * itemsize
    f32_tile = tile_rows * d_block * 4
    live = 4 * tile_bytes + 2 * f32_tile + (1 << 20)
    vmem_limit = int(min(max(2 * live, 32 << 20), 48 << 20))

    compiler_params = pltpu.CompilerParams(
        dimension_semantics=("parallel",),
        vmem_limit_bytes=vmem_limit,
    )

    if packed:
        out = pl.pallas_call(
            _rmsnorm_packed_kernel,
            out_shape=jax.ShapeDtypeStruct((rows, d_block), x.dtype),
            grid=grid,
            in_specs=[
                pl.BlockSpec((tile_rows, d_block), lambda i: (i, 0)),
                pl.BlockSpec((1, d_block), lambda i: (0, 0)),        # gamma resident
                pl.BlockSpec((d_block, d_block), lambda i: (0, 0)),  # seg matrix resident
            ],
            out_specs=pl.BlockSpec((tile_rows, d_block), lambda i: (i, 0)),
            compiler_params=compiler_params,
        )(x2d, g2d, seg)
    else:
        out = pl.pallas_call(
            _rmsnorm_kernel,
            out_shape=jax.ShapeDtypeStruct((rows, d_block), x.dtype),
            grid=grid,
            in_specs=[
                pl.BlockSpec((tile_rows, d_block), lambda i: (i, 0)),
                pl.BlockSpec((1, d_block), lambda i: (0, 0)),        # gamma resident
            ],
            out_specs=pl.BlockSpec((tile_rows, d_block), lambda i: (i, 0)),
            compiler_params=compiler_params,
        )(x2d, g2d)

    return out.reshape(orig_shape)


def _reference(x, gamma):
    D = x.shape[-1]
    xf = x.astype(jnp.float32)
    denom = jnp.maximum(jnp.linalg.norm(xf, axis=-1, keepdims=True), _EPS)
    return (xf / denom * (D ** 0.5) * gamma.astype(jnp.float32)).astype(x.dtype)


if __name__ == "__main__":
    key = jax.random.PRNGKey(0)

    # Small shapes consistent with the module: (batch, seq, hidden).
    B, S, D = 2, 8, 32
    x = jax.random.normal(key, (B, S, D), dtype=jnp.float32)
    gamma = jnp.ones((D,), dtype=jnp.float32)  # nn.Parameter(torch.ones(dim))

    out = jax.block_until_ready(rms_norm(x, gamma))   # exercises lane-packed path
    ref = _reference(x, gamma)
    assert out.shape == x.shape and out.dtype == x.dtype
    assert jnp.allclose(out, ref, atol=1e-4, rtol=1e-4)

    # Ragged-row case (rows not a multiple of pack factor) -> fallback path
    # with a masked tail block.
    x2 = jax.random.normal(jax.random.PRNGKey(1), (3, 5, D), dtype=jnp.float32)
    out2 = jax.block_until_ready(rms_norm(x2, gamma))
    ref2 = _reference(x2, gamma)
    assert jnp.allclose(out2, ref2, atol=1e-4, rtol=1e-4)

    # bf16 activations, larger D (>=128): exercises dtype-aware sublane packing
    # and the multi-step parallel grid on the standard path.
    D3 = 256
    x3 = jax.random.normal(jax.random.PRNGKey(2), (4, 16, D3), dtype=jnp.bfloat16)
    gamma3 = jnp.ones((D3,), dtype=jnp.float32)
    out3 = jax.block_until_ready(rms_norm(x3, gamma3))
    ref3 = _reference(x3, gamma3)
    assert out3.dtype == x3.dtype
    assert jnp.allclose(out3.astype(jnp.float32), ref3.astype(jnp.float32),
                        atol=5e-2, rtol=5e-2)

    print("KERNEL_OK")
</pallas_src>

<mosaic_0001>
module attributes {stable_mosaic.version = 11 : i64} {
  func.func @_rmsnorm_packed_kernel(%arg0: i32, %arg1: memref<8x128xf32, #tpu.memory_space<vmem>>, %arg2: memref<1x128xf32, #tpu.memory_space<vmem>>, %arg3: memref<128x128xf32, #tpu.memory_space<vmem>>, %arg4: memref<8x128xf32, #tpu.memory_space<vmem>>) attributes {dimension_semantics = [#tpu.dimension_semantics<parallel>], iteration_bounds = array<i64: 1>, scalar_prefetch = 0 : i64, scratch_operands = 0 : i64, tpu.core_type = #tpu.core_type<tc>, window_params = [{transform_indices = @transform_0, window_bounds = array<i64: 8, 128>}, {pipeline_mode = #tpu.pipeline_mode<synchronous>, transform_indices = @transform_1, window_bounds = array<i64: 1, 128>}, {pipeline_mode = #tpu.pipeline_mode<synchronous>, transform_indices = @transform_2, window_bounds = array<i64: 128, 128>}, {transform_indices = @transform_3, window_bounds = array<i64: 8, 128>}]} {
    %c0 = arith.constant 0 : index
    %c0_0 = arith.constant 0 : index
    %0 = vector.load %arg1[%c0, %c0_0] : memref<8x128xf32, #tpu.memory_space<vmem>>, vector<8x128xf32>
    %1 = arith.mulf %0, %0 : vector<8x128xf32>
    %c0_1 = arith.constant 0 : index
    %c0_2 = arith.constant 0 : index
    %2 = vector.load %arg3[%c0_1, %c0_2] : memref<128x128xf32, #tpu.memory_space<vmem>>, vector<128x128xf32>
    %cst = arith.constant dense<0.000000e+00> : vector<8x128xf32>
    %3 = tpu.matmul %1, %2, %cst {dimension_numbers = #tpu.dot_dimension_numbers<[1], [0], [0], [1], [0, 0, 1, 1], [], []>} : vector<8x128xf32>, vector<128x128xf32>, vector<8x128xf32> -> vector<8x128xf32>
    %cst_3 = arith.constant 1.000000e-24 : f32
    %4 = vector.broadcast %cst_3 : f32 to vector<8x128xf32>
    %5 = arith.maximumf %3, %4 : vector<8x128xf32>
    %6 = math.rsqrt %5 : vector<8x128xf32>
    %7 = arith.mulf %0, %6 : vector<8x128xf32>
    %c0_4 = arith.constant 0 : index
    %c0_5 = arith.constant 0 : index
    %8 = vector.load %arg2[%c0_4, %c0_5] : memref<1x128xf32, #tpu.memory_space<vmem>>, vector<1x128xf32>
    %9 = vector.broadcast %8 : vector<1x128xf32> to vector<8x128xf32>
    %10 = arith.mulf %7, %9 : vector<8x128xf32>
    %c0_6 = arith.constant 0 : index
    %c0_7 = arith.constant 0 : index
    %11 = vector.load %arg4[%c0_6, %c0_7] : memref<8x128xf32, #tpu.memory_space<vmem>>, vector<8x128xf32>
    tpu.vector_store %arg4[%c0_6, %c0_7], %10 {strides = array<i32>} : memref<8x128xf32, #tpu.memory_space<vmem>>, vector<8x128xf32>,
    return
  }
  func.func @transform_0(%arg0: i32) -> (i32, i32) {
    %c0_i32 = arith.constant 0 : i32
    %c0_i32_0 = arith.constant 0 : i32
    return %arg0, %c0_i32 : i32, i32
  }
  func.func @transform_1(%arg0: i32) -> (i32, i32) {
    %c0_i32 = arith.constant 0 : i32
    %c0_i32_0 = arith.constant 0 : i32
    %c0_i32_1 = arith.constant 0 : i32
    return %c0_i32, %c0_i32_0 : i32, i32
  }
  func.func @transform_2(%arg0: i32) -> (i32, i32) {
    %c0_i32 = arith.constant 0 : i32
    %c0_i32_0 = arith.constant 0 : i32
    %c0_i32_1 = arith.constant 0 : i32
    return %c0_i32, %c0_i32_0 : i32, i32
  }
  func.func @transform_3(%arg0: i32) -> (i32, i32) {
    %c0_i32 = arith.constant 0 : i32
    %c0_i32_0 = arith.constant 0 : i32
    return %arg0, %c0_i32 : i32, i32
  }
}

</mosaic_0001>

<llo_original>
// kernel: tpu_custom_call.1
$region0: #{tpu_custom_call.1}
  #allocation0 [shape = 'u32[]', space=smem, size = 0x4, offset = 0x4, fixed_abs, tag = 'smem constant byte address 0x4 - core index']
  #allocation1 [shape = 'u32[144,128]{1,0:T(1,128)}', space=vmem, size = 0x12000, scoped, tag = 'internal scratch']
  %s0 = inlined_call_operand.hbm [shape: f32[4,128], index: 0, kind: input, shape index: {}]
  %s1 = inlined_call_operand.vmem [shape: f32[1,128], index: 1, kind: input, shape index: {}]
  %s2 = inlined_call_operand.hbm [shape: f32[128,128], index: 2, kind: input, shape index: {}]
  %s3 = inlined_call_operand.hbm [shape: f32[4,128], index: 3, kind: output, shape index: {}]
  %s4 = sld [smem:[#allocation0]]
  $region30: #{tpu_custom_call.1} parent=0
    _
  %s6 = ssub.s32 1, %s4
  %s7 = scalar_select 0, %s6, %s4
  $region1: #{tpu_custom_call.1} parent=0
    #allocation2 [shape = 'u8[4096]{0}', space=vmem, size = 0x1000, scoped, tag = 'input window, operand 0, single buffered']
    #allocation3 [shape = 's32[1]{0}', space=sflag, size = 0x4, scoped, tag = 'scoped memory for tpu_custom_call.1']
    #allocation4 [shape = 's32[1]{0}', space=sflag, size = 0x4, scoped, tag = 'scoped memory for tpu_custom_call.1']
    #allocation5 [shape = 'u8[65536]{0}', space=vmem, size = 0x10000, scoped, tag = 'input window, operand 2, single buffered']
    #allocation6 [shape = 's32[1]{0}', space=sflag, size = 0x4, scoped, tag = 'scoped memory for tpu_custom_call.1']
    #allocation7 [shape = 'u8[4096]{0}', space=vmem, size = 0x1000, scoped, tag = 'output window, operand 0, single buffered']
    %8 = vsyncpa [#allocation3], 0
    %9 = vsyncpa [#allocation6], 0
    %10 = vsyncpa [#allocation4], 0
    // Predicated region
    $region2: #{tpu_custom_call.1} parent=1 // pred_check
      _
    $region3: #{tpu_custom_call.1} parent=1 // pred_check_branch
      %12 = sbr.rel (0) target = $region5
    $region4: #{tpu_custom_call.1} parent=1 // pred_region
      %s14 = ssub.s32 128, 64
      %15 = vsyncadd [#allocation3], %s14
      %s16 = sshll.u32 [#allocation2], 4
      %s17 = int_to_ptr.vmem [resolvable:$true] %s16
      %22 = dma.hbm_to_vmem [thread:$0]  %s0, 64, %s17, [#allocation3], 64, 64, 4
    $region5: #{tpu_custom_call.1} parent=1 // pred_fallthru
      _
    // Predicated region
    $region6: #{tpu_custom_call.1} parent=1 // pred_check
      _
    $region7: #{tpu_custom_call.1} parent=1 // pred_check_branch
      %24 = sbr.rel (0) target = $region9
    $region8: #{tpu_custom_call.1} parent=1 // pred_region
      _
    $region9: #{tpu_custom_call.1} parent=1 // pred_fallthru
      _
    // Predicated region
    $region10: #{tpu_custom_call.1} parent=1 // pred_check
      _
    $region11: #{tpu_custom_call.1} parent=1 // pred_check_branch
      %26 = sbr.rel (0) target = $region13
    $region12: #{tpu_custom_call.1} parent=1 // pred_region
      %s28 = ssub.s32 2048, 2048
      %29 = vsyncadd [#allocation6], %s28
      %s30 = sshll.u32 [#allocation5], 4
      %s31 = int_to_ptr.vmem [resolvable:$true] %s30
      %36 = dma.hbm_to_vmem [thread:$0]  %s2, 2048, %s31, [#allocation6], 128, 128, 8
    $region13: #{tpu_custom_call.1} parent=1 // pred_fallthru
      _
    // Predicated region
    $region14: #{tpu_custom_call.1} parent=1 // pred_check
      _
    $region15: #{tpu_custom_call.1} parent=1 // pred_check_branch
      %38 = sbr.rel (0) target = $region17
    $region16: #{tpu_custom_call.1} parent=1 // pred_region
      %39 = dma.done [#allocation3], 128
    $region17: #{tpu_custom_call.1} parent=1 // pred_fallthru
      _
    // Predicated region
    $region18: #{tpu_custom_call.1} parent=1 // pred_check
      _
    $region19: #{tpu_custom_call.1} parent=1 // pred_check_branch
      %41 = sbr.rel (0) target = $region21
    $region20: #{tpu_custom_call.1} parent=1 // pred_region
      %42 = dma.done [#allocation6], 2048
    $region21: #{tpu_custom_call.1} parent=1 // pred_fallthru
      _
    %v43 = vld [vmem:[#allocation2] sm:$0xff]
    %v44 = vmul.f32 %v43, %v43
    %v45 = vld [vmem:[#allocation5] sm:$0xff]
    %v46 = vld [vmem:[#allocation5 + $0x8] sm:$0xff]
    %v47 = vld [vmem:[#allocation5 + $0x10] sm:$0xff]
    %v48 = vld [vmem:[#allocation5 + $0x18] sm:$0xff]
    %v49 = vld [vmem:[#allocation5 + $0x20] sm:$0xff]
    %v50 = vld [vmem:[#allocation5 + $0x28] sm:$0xff]
    %v51 = vld [vmem:[#allocation5 + $0x30] sm:$0xff]
    %v52 = vld [vmem:[#allocation5 + $0x38] sm:$0xff]
    %v53 = vld [vmem:[#allocation5 + $0x40] sm:$0xff]
    %v54 = vld [vmem:[#allocation5 + $0x48] sm:$0xff]
    %v55 = vld [vmem:[#allocation5 + $0x50] sm:$0xff]
    %v56 = vld [vmem:[#allocation5 + $0x58] sm:$0xff]
    %v57 = vld [vmem:[#allocation5 + $0x60] sm:$0xff]
    %v58 = vld [vmem:[#allocation5 + $0x68] sm:$0xff]
    %v59 = vld [vmem:[#allocation5 + $0x70] sm:$0xff]
    %v60 = vld [vmem:[#allocation5 + $0x78] sm:$0xff]
    %61 = vmatprep.subr.mxu0 0.0
    %62 = vmatpush1.msra.mxu0 %v45
    %63 = vmatprep.subr.mxu0 0.0
    %64 = vmatpush1.msra.mxu0 %v46
    %65 = vmatprep.subr.mxu0 0.0
    %66 = vmatpush1.msra.mxu0 %v47
    %67 = vmatprep.subr.mxu0 0.0
    %68 = vmatpush1.msra.mxu0 %v48
    %69 = vmatprep.subr.mxu0 0.0
    %70 = vmatpush1.msra.mxu0 %v49
    %71 = vmatprep.subr.mxu0 0.0
    %72 = vmatpush1.msra.mxu0 %v50
    %73 = vmatprep.subr.mxu0 0.0
    %74 = vmatpush1.msra.mxu0 %v51
    %75 = vmatprep.subr.mxu0 0.0
    %76 = vmatpush1.msra.mxu0 %v52
    %77 = vmatprep.subr.mxu0 0.0
    %78 = vmatpush1.msra.mxu0 %v53
    %79 = vmatprep.subr.mxu0 0.0
    %80 = vmatpush1.msra.mxu0 %v54
    %81 = vmatprep.subr.mxu0 0.0
    %82 = vmatpush1.msra.mxu0 %v55
    %83 = vmatprep.subr.mxu0 0.0
    %84 = vmatpush1.msra.mxu0 %v56
    %85 = vmatprep.subr.mxu0 0.0
    %86 = vmatpush1.msra.mxu0 %v57
    %87 = vmatprep.subr.mxu0 0.0
    %88 = vmatpush1.msra.mxu0 %v58
    %89 = vmatprep.subr.mxu0 0.0
    %90 = vmatpush1.msra.mxu0 %v59
    %91 = vmatprep.subr.mxu0 0.0
    %92 = vmatpush1.msra.mxu0 %v60
    %93 = vmatprep.subr.mxu0 0.0
    %94 = vmatpush1.msra.mxu0 0.0
    %95 = vmatprep.subr.mxu0 0.0
    %96 = vmatpush1.msra.mxu0 0.0
    %97 = vmatprep.subr.mxu0 0.0
    %98 = vmatpush1.msra.mxu0 0.0
    %99 = vmatprep.subr.mxu0 0.0
    %100 = vmatpush1.msra.mxu0 0.0
    %101 = vmatprep.subr.mxu0 0.0
    %102 = vmatpush1.msra.mxu0 0.0
    %103 = vmatprep.subr.mxu0 0.0
    %104 = vmatpush1.msra.mxu0 0.0
    %105 = vmatprep.subr.mxu0 0.0
    %106 = vmatpush1.msra.mxu0 0.0
    %107 = vmatprep.subr.mxu0 0.0
    %108 = vmatpush1.msra.mxu0 0.0
    %109 = vmatprep.subr.mxu0 0.0
    %110 = vmatpush1.msra.mxu0 0.0
    %111 = vmatprep.subr.mxu0 0.0
    %112 = vmatpush1.msra.mxu0 0.0
    %113 = vmatprep.subr.mxu0 0.0
    %114 = vmatpush1.msra.mxu0 0.0
    %115 = vmatprep.subr.mxu0 0.0
    %116 = vmatpush1.msra.mxu0 0.0
    %117 = vmatprep.subr.mxu0 0.0
    %118 = vmatpush1.msra.mxu0 0.0
    %119 = vmatprep.subr.mxu0 0.0
    %120 = vmatpush1.msra.mxu0 0.0
    %121 = vmatprep.subr.mxu0 0.0
    %122 = vmatpush1.msra.mxu0 0.0
    %123 = vmatprep.subr.mxu0 0.0
    %124 = vmatpush1.msra.mxu0 0.0
    %125 = vmatprep.mubr.f32.mxu0 0.0
    %126 = vmatmul.mubr.f32.gmra.mrb[0].mxu0 %v44
    %v127 = vpop.f32.mrb[0].mxu0
    %v128 = vadd.f32 0.0, %v127
    %v129 = vpop.f32.mrb[0].mxu0
    %130 = vdwg.mxu0
    %v131 = vmax.f32 %v128, 1e-24
    %v132 = vrsqrt.pop %v131
    %v133 = vmul.f32 %v43, %v132
    %v134 = vld [vmem:[%s1] sm:$0x1]
    %v136 = vlaneseq
    %v137 = vshrl.u32 %v136, 7
    %v138 = vsub.s32 0, %v137
    %v139 = vrot.slane %v134, %v138
    %v141 = vmul.f32 %v133, %v139
    %142 = vst [vmem:[#allocation7] sm:$0xff] %v141
    // Predicated region
    $region22: #{tpu_custom_call.1} parent=1 // pred_check
      _
    $region23: #{tpu_custom_call.1} parent=1 // pred_check_branch
      %144 = sbr.rel (0) target = $region25
    $region24: #{tpu_custom_call.1} parent=1 // pred_region
      %s146 = ssub.s32 128, 64
      %147 = vsyncadd [#allocation4], %s146
      %s148 = sshll.u32 [#allocation7], 4
      %s149 = int_to_ptr.vmem [resolvable:$true] %s148
      %154 = dma.vmem_to_hbm [thread:$0]  %s149, 64, %s3, [#allocation4], 64, 64, 4
    $region25: #{tpu_custom_call.1} parent=1 // pred_fallthru
      _
    // Predicated region
    $region26: #{tpu_custom_call.1} parent=1 // pred_check
      _
    $region27: #{tpu_custom_call.1} parent=1 // pred_check_branch
      %156 = sbr.rel (0) target = $region29
    $region28: #{tpu_custom_call.1} parent=1 // pred_region
      %157 = dma.done [#allocation4], 128
    $region29: #{tpu_custom_call.1} parent=1 // pred_fallthru
      _
    %158 = vsyncpa [#allocation3], 1
    %159 = vsyncpa [#allocation6], 1
    %160 = vsyncpa [#allocation4], 1

</llo_original>
